<compile_context>
chip_gen: v7x
topology: tpu7x:2x2x1
jax: 0.10.0
libtpu: 0.0.40
codegen_flags: <defaults>
</compile_context>

<pallas_src>
import functools

import jax
import jax.numpy as jnp
from jax.experimental import pallas as pl
from jax.experimental.pallas import tpu as pltpu


def latent_model_kernel(x_ref, w1t_ref, b1_ref, w2t_ref, b2t_ref,
                        out_t_ref, fmap_t_ref, acc_ref, *, inv_hw):
    # x_ref    : (B, C, HWt)   one batch block x one spatial tile (NCHW-native)
    # w1t_ref  : (F, C)        1x1-conv weight, transposed
    # b1_ref   : (F, 1)        conv bias (column)
    # w2t_ref  : (NC, F)       last-layer Linear weight, transposed
    # b2t_ref  : (NC, 1)       last-layer bias (column)
    # out_t_ref : (1, NC, B)   logits (transposed; batch block on lanes)
    # fmap_t_ref: (1, F, B)    pooled penultimate features (transposed)
    # acc_ref   : (F, B) f32   pooled-sum accumulator, lives across HW tiles
    h = pl.program_id(1)

    @pl.when(h == 0)
    def _init():
        acc_ref[...] = jnp.zeros_like(acc_ref)

    w1t = w1t_ref[...]
    b1 = b1_ref[...]
    n_imgs = x_ref.shape[0]
    # Small, static batch block -> unrolled 2-D matmuls (Mosaic-friendly).
    for b in range(n_imgs):
        feat = jnp.dot(w1t, x_ref[b],
                       preferred_element_type=jnp.float32)    # (F, HWt)  MXU
        feat = jnp.maximum(feat + b1, 0.0)                    # ReLU      VPU
        s = jnp.sum(feat, axis=-1, keepdims=True)             # (F, 1)    lane reduce
        acc_ref[:, b:b + 1] = acc_ref[:, b:b + 1] + s

    @pl.when(h == pl.num_programs(1) - 1)
    def _finalize():
        pooled_t = acc_ref[...] * inv_hw                      # (F, B) global avg pool
        fmap_t_ref[0] = pooled_t
        out_t_ref[0] = jnp.dot(w2t_ref[...], pooled_t,
                               preferred_element_type=jnp.float32) + b2t_ref[...]


def _largest_divisor_leq(n, cap):
    d = max(1, min(n, cap))
    while n % d:
        d -= 1
    return d


def _pick_hw_tile(hw, cap=4096):
    # Largest multiple of 128 that divides HW (<= cap); else use the full extent.
    best = None
    t = 128
    while t <= min(hw, cap):
        if hw % t == 0:
            best = t
        t += 128
    return best if best is not None else hw


def latent_model_forward(x_nchw, params, latent=True, *, b_blk=None, hw_tile=None):
    N, C, H, W = x_nchw.shape
    HW = H * W
    F = params["w1"].shape[1]
    NC = params["w2"].shape[1]

    if b_blk is None:
        b_blk = _largest_divisor_leq(N, 8)
    if hw_tile is None:
        hw_tile = _pick_hw_tile(HW)
    assert N % b_blk == 0 and HW % hw_tile == 0
    nb = N // b_blk
    nh = HW // hw_tile

    # NCHW -> (N, C, H*W): pure reshape, no transpose; spatial is the lane dim.
    x = x_nchw.reshape(N, C, HW).astype(jnp.float32)

    # Tiny one-time weight re-orientations (outside the kernel).
    w1t = params["w1"].T.astype(jnp.float32)                # (F, C)
    b1c = params["b1"].reshape(F, 1).astype(jnp.float32)    # (F, 1)
    w2t = params["w2"].T.astype(jnp.float32)                # (NC, F)
    b2c = params["b2"].reshape(NC, 1).astype(jnp.float32)   # (NC, 1)

    kernel = functools.partial(latent_model_kernel, inv_hw=1.0 / HW)

    out_t, fmap_t = pl.pallas_call(
        kernel,
        out_shape=(
            jax.ShapeDtypeStruct((nb, NC, b_blk), jnp.float32),
            jax.ShapeDtypeStruct((nb, F, b_blk), jnp.float32),
        ),
        grid_spec=pltpu.PrefetchScalarGridSpec(
            num_scalar_prefetch=0,
            grid=(nb, nh),                                   # reduction (HW) axis last
            in_specs=[
                pl.BlockSpec((b_blk, C, hw_tile), lambda i, h: (i, 0, h)),
                pl.BlockSpec((F, C), lambda i, h: (0, 0)),
                pl.BlockSpec((F, 1), lambda i, h: (0, 0)),
                pl.BlockSpec((NC, F), lambda i, h: (0, 0)),
                pl.BlockSpec((NC, 1), lambda i, h: (0, 0)),
            ],
            out_specs=[
                pl.BlockSpec((1, NC, b_blk), lambda i, h: (i, 0, 0)),
                pl.BlockSpec((1, F, b_blk), lambda i, h: (i, 0, 0)),
            ],
            scratch_shapes=[pltpu.VMEM((F, b_blk), jnp.float32)],
        ),
        compiler_params=pltpu.CompilerParams(
            dimension_semantics=("parallel", "arbitrary"),
            vmem_limit_bytes=48 * 1024 * 1024,
        ),
    )(x, w1t, b1c, w2t, b2c)

    # (nb, NC, B) -> (N, NC); (nb, F, B) -> (N, F).  Tiny re-orientation.
    logits = out_t.transpose(0, 2, 1).reshape(N, NC)
    feature_map = fmap_t.transpose(0, 2, 1).reshape(N, F)
    if latent:
        return logits, feature_map
    return logits


def make_params(key, c_in, num_ftrs, num_class):
    k1, k2 = jax.random.split(key)
    # initial_layer: weight ~ N(0, 0.01), bias = 0 (deterministic, seed fixed).
    w1 = 0.01 * jax.random.normal(k1, (c_in, num_ftrs), dtype=jnp.float32)
    b1 = jnp.zeros((1, num_ftrs), dtype=jnp.float32)
    w2 = 0.01 * jax.random.normal(k2, (num_ftrs, num_class), dtype=jnp.float32)
    b2 = jnp.zeros((1, num_class), dtype=jnp.float32)
    return {"w1": w1, "b1": b1, "w2": w2, "b2": b2}


def ref_forward(x_nchw, params):
    N, C, H, W = x_nchw.shape
    xr = x_nchw.reshape(N, C, H * W)
    feat = jnp.einsum("nch,cf->nhf", xr, params["w1"],
                      precision=jax.lax.Precision.HIGHEST) + params["b1"]
    feat = jnp.maximum(feat, 0.0)
    pooled = feat.mean(axis=1)                                      # (N, F)
    logits = jnp.dot(pooled, params["w2"],
                     precision=jax.lax.Precision.HIGHEST) + params["b2"]
    return logits, pooled


if __name__ == "__main__":
    key = jax.random.PRNGKey(0)
    kx, kp = jax.random.split(key)

    N, C, H, W = 2, 4, 16, 16
    NUM_FTRS, NUM_CLASS = 32, 8

    x = jax.random.normal(kx, (N, C, H, W), dtype=jnp.float32)      # NCHW like PyTorch
    params = make_params(kp, C, NUM_FTRS, NUM_CLASS)

    # hw_tile=128 -> two spatial tiles: exercises the pooled-sum accumulation path.
    logits, feature_map = latent_model_forward(x, params, latent=True, hw_tile=128)
    logits = jax.block_until_ready(logits)
    feature_map = jax.block_until_ready(feature_map)

    ref_logits, ref_fmap = ref_forward(x, params)
    assert logits.shape == (N, NUM_CLASS) and feature_map.shape == (N, NUM_FTRS)
    assert jnp.allclose(logits, ref_logits, atol=1e-5, rtol=1e-5)
    assert jnp.allclose(feature_map, ref_fmap, atol=1e-5, rtol=1e-5)

    print("KERNEL_OK")
</pallas_src>

<mosaic_0001>
module attributes {stable_mosaic.version = 11 : i64} {
  func.func @latent_model_kernel(%arg0: i32, %arg1: i32, %arg2: memref<2x4x128xf32, #tpu.memory_space<vmem>>, %arg3: memref<32x4xf32, #tpu.memory_space<vmem>>, %arg4: memref<32x1xf32, #tpu.memory_space<vmem>>, %arg5: memref<8x32xf32, #tpu.memory_space<vmem>>, %arg6: memref<8x1xf32, #tpu.memory_space<vmem>>, %arg7: memref<1x8x2xf32, #tpu.memory_space<vmem>>, %arg8: memref<1x32x2xf32, #tpu.memory_space<vmem>>, %arg9: memref<32x2xf32, #tpu.memory_space<vmem>>) attributes {dimension_semantics = [#tpu.dimension_semantics<parallel>, #tpu.dimension_semantics<arbitrary>], iteration_bounds = array<i64: 1, 2>, scalar_prefetch = 0 : i64, scratch_operands = 1 : i64, tpu.core_type = #tpu.core_type<tc>, window_params = [{transform_indices = @transform_0, window_bounds = array<i64: 2, 4, 128>}, {pipeline_mode = #tpu.pipeline_mode<synchronous>, transform_indices = @transform_1, window_bounds = array<i64: 32, 4>}, {pipeline_mode = #tpu.pipeline_mode<synchronous>, transform_indices = @transform_2, window_bounds = array<i64: 32, 1>}, {pipeline_mode = #tpu.pipeline_mode<synchronous>, transform_indices = @transform_3, window_bounds = array<i64: 8, 32>}, {pipeline_mode = #tpu.pipeline_mode<synchronous>, transform_indices = @transform_4, window_bounds = array<i64: 8, 1>}, {transform_indices = @transform_5, window_bounds = array<i64: 1, 8, 2>}, {transform_indices = @transform_6, window_bounds = array<i64: 1, 32, 2>}]} {
    %c0_i32 = arith.constant 0 : i32
    %0 = arith.cmpi eq, %arg1, %c0_i32 : i32
    %1 = arith.extui %0 : i1 to i32
    %c0_i32_0 = arith.constant 0 : i32
    %2 = arith.cmpi ne, %1, %c0_i32_0 : i32
    scf.if %2 {
      %cst_23 = arith.constant 0.000000e+00 : f32
      %32 = vector.broadcast %cst_23 : f32 to vector<32x2xf32>
      %c0_24 = arith.constant 0 : index
      %c0_25 = arith.constant 0 : index
      %33 = vector.load %arg9[%c0_24, %c0_25] : memref<32x2xf32, #tpu.memory_space<vmem>>, vector<32x2xf32>
      tpu.vector_store %arg9[%c0_24, %c0_25], %32 {strides = array<i32>} : memref<32x2xf32, #tpu.memory_space<vmem>>, vector<32x2xf32>,
    } else {
    }
    %c0 = arith.constant 0 : index
    %c0_1 = arith.constant 0 : index
    %3 = vector.load %arg3[%c0, %c0_1] : memref<32x4xf32, #tpu.memory_space<vmem>>, vector<32x4xf32>
    %c0_2 = arith.constant 0 : index
    %c0_3 = arith.constant 0 : index
    %4 = vector.load %arg4[%c0_2, %c0_3] : memref<32x1xf32, #tpu.memory_space<vmem>>, vector<32x1xf32>
    %c0_4 = arith.constant 0 : index
    %c0_5 = arith.constant 0 : index
    %c0_6 = arith.constant 0 : index
    %5 = vector.load %arg2[%c0_4, %c0_5, %c0_6] : memref<2x4x128xf32, #tpu.memory_space<vmem>>, vector<1x4x128xf32>
    %6 = vector.shape_cast %5 : vector<1x4x128xf32> to vector<4x128xf32>
    %cst = arith.constant dense<0.000000e+00> : vector<32x128xf32>
    %7 = tpu.matmul %3, %6, %cst {dimension_numbers = #tpu.dot_dimension_numbers<[1], [0], [0], [1], [0, 0, 1, 1], [], []>} : vector<32x4xf32>, vector<4x128xf32>, vector<32x128xf32> -> vector<32x128xf32>
    %8 = vector.broadcast %4 : vector<32x1xf32> to vector<32x128xf32>
    %9 = arith.addf %7, %8 : vector<32x128xf32>
    %cst_7 = arith.constant 0.000000e+00 : f32
    %10 = vector.broadcast %cst_7 : f32 to vector<32x128xf32>
    %11 = arith.maximumf %9, %10 : vector<32x128xf32>
    %cst_8 = arith.constant dense<0.000000e+00> : vector<32xf32>
    %12 = vector.multi_reduction <add>, %11, %cst_8 [1] : vector<32x128xf32> to vector<32xf32>
    %13 = vector.shape_cast %12 : vector<32xf32> to vector<32x1xf32>
    %c0_9 = arith.constant 0 : index
    %c0_10 = arith.constant 0 : index
    %14 = vector.load %arg9[%c0_9, %c0_10] : memref<32x2xf32, #tpu.memory_space<vmem>>, vector<32x1xf32>
    %15 = arith.addf %14, %13 : vector<32x1xf32>
    %c0_11 = arith.constant 0 : index
    %c0_12 = arith.constant 0 : index
    %16 = vector.load %arg9[%c0_11, %c0_12] : memref<32x2xf32, #tpu.memory_space<vmem>>, vector<32x1xf32>
    tpu.vector_store %arg9[%c0_11, %c0_12], %15 {strides = array<i32>} : memref<32x2xf32, #tpu.memory_space<vmem>>, vector<32x1xf32>,
    %c1 = arith.constant 1 : index
    %c0_13 = arith.constant 0 : index
    %c0_14 = arith.constant 0 : index
    %17 = vector.load %arg2[%c1, %c0_13, %c0_14] : memref<2x4x128xf32, #tpu.memory_space<vmem>>, vector<1x4x128xf32>
    %18 = vector.shape_cast %17 : vector<1x4x128xf32> to vector<4x128xf32>
    %cst_15 = arith.constant dense<0.000000e+00> : vector<32x128xf32>
    %19 = tpu.matmul %3, %18, %cst_15 {dimension_numbers = #tpu.dot_dimension_numbers<[1], [0], [0], [1], [0, 0, 1, 1], [], []>} : vector<32x4xf32>, vector<4x128xf32>, vector<32x128xf32> -> vector<32x128xf32>
    %20 = vector.broadcast %4 : vector<32x1xf32> to vector<32x128xf32>
    %21 = arith.addf %19, %20 : vector<32x128xf32>
    %cst_16 = arith.constant 0.000000e+00 : f32
    %22 = vector.broadcast %cst_16 : f32 to vector<32x128xf32>
    %23 = arith.maximumf %21, %22 : vector<32x128xf32>
    %cst_17 = arith.constant dense<0.000000e+00> : vector<32xf32>
    %24 = vector.multi_reduction <add>, %23, %cst_17 [1] : vector<32x128xf32> to vector<32xf32>
    %25 = vector.shape_cast %24 : vector<32xf32> to vector<32x1xf32>
    %c0_18 = arith.constant 0 : index
    %c1_19 = arith.constant 1 : index
    %26 = vector.load %arg9[%c0_18, %c1_19] : memref<32x2xf32, #tpu.memory_space<vmem>>, vector<32x1xf32>
    %27 = arith.addf %26, %25 : vector<32x1xf32>
    %c0_20 = arith.constant 0 : index
    %c1_21 = arith.constant 1 : index
    %28 = vector.load %arg9[%c0_20, %c1_21] : memref<32x2xf32, #tpu.memory_space<vmem>>, vector<32x1xf32>
    tpu.vector_store %arg9[%c0_20, %c1_21], %27 {strides = array<i32>} : memref<32x2xf32, #tpu.memory_space<vmem>>, vector<32x1xf32>,
    %c1_i32 = arith.constant 1 : i32
    %29 = arith.cmpi eq, %arg1, %c1_i32 : i32
    %30 = arith.extui %29 : i1 to i32
    %c0_i32_22 = arith.constant 0 : i32
    %31 = arith.cmpi ne, %30, %c0_i32_22 : i32
    scf.if %31 {
      %c0_23 = arith.constant 0 : index
      %c0_24 = arith.constant 0 : index
      %32 = vector.load %arg9[%c0_23, %c0_24] : memref<32x2xf32, #tpu.memory_space<vmem>>, vector<32x2xf32>
      %cst_25 = arith.constant 3.906250e-03 : f32
      %33 = vector.broadcast %cst_25 : f32 to vector<32x2xf32>
      %34 = arith.mulf %32, %33 : vector<32x2xf32>
      %c0_26 = arith.constant 0 : index
      %c0_27 = arith.constant 0 : index
      %c0_28 = arith.constant 0 : index
      %35 = vector.load %arg8[%c0_26, %c0_27, %c0_28] : memref<1x32x2xf32, #tpu.memory_space<vmem>>, vector<1x32x2xf32>
      %36 = vector.shape_cast %35 : vector<1x32x2xf32> to vector<32x2xf32>
      %37 = vector.shape_cast %34 : vector<32x2xf32> to vector<1x32x2xf32>
      tpu.vector_store %arg8[%c0_26, %c0_27, %c0_28], %37 {strides = array<i32>} : memref<1x32x2xf32, #tpu.memory_space<vmem>>, vector<1x32x2xf32>,
      %c0_29 = arith.constant 0 : index
      %c0_30 = arith.constant 0 : index
      %38 = vector.load %arg5[%c0_29, %c0_30] : memref<8x32xf32, #tpu.memory_space<vmem>>, vector<8x32xf32>
      %cst_31 = arith.constant dense<0.000000e+00> : vector<8x2xf32>
      %39 = tpu.matmul %38, %34, %cst_31 {dimension_numbers = #tpu.dot_dimension_numbers<[1], [0], [0], [1], [0, 0, 1, 1], [], []>} : vector<8x32xf32>, vector<32x2xf32>, vector<8x2xf32> -> vector<8x2xf32>
      %c0_32 = arith.constant 0 : index
      %c0_33 = arith.constant 0 : index
      %40 = vector.load %arg6[%c0_32, %c0_33] : memref<8x1xf32, #tpu.memory_space<vmem>>, vector<8x1xf32>
      %41 = vector.broadcast %40 : vector<8x1xf32> to vector<8x2xf32>
      %42 = arith.addf %39, %41 : vector<8x2xf32>
      %c0_34 = arith.constant 0 : index
      %c0_35 = arith.constant 0 : index
      %c0_36 = arith.constant 0 : index
      %43 = vector.load %arg7[%c0_34, %c0_35, %c0_36] : memref<1x8x2xf32, #tpu.memory_space<vmem>>, vector<1x8x2xf32>
      %44 = vector.shape_cast %43 : vector<1x8x2xf32> to vector<8x2xf32>
      %45 = vector.shape_cast %42 : vector<8x2xf32> to vector<1x8x2xf32>
      tpu.vector_store %arg7[%c0_34, %c0_35, %c0_36], %45 {strides = array<i32>} : memref<1x8x2xf32, #tpu.memory_space<vmem>>, vector<1x8x2xf32>,
    } else {
    }
    return
  }
  func.func @transform_0(%arg0: i32, %arg1: i32) -> (i32, i32, i32) {
    %c0_i32 = arith.constant 0 : i32
    %c0_i32_0 = arith.constant 0 : i32
    return %arg0, %c0_i32, %arg1 : i32, i32, i32
  }
  func.func @transform_1(%arg0: i32, %arg1: i32) -> (i32, i32) {
    %c0_i32 = arith.constant 0 : i32
    %c0_i32_0 = arith.constant 0 : i32
    %c0_i32_1 = arith.constant 0 : i32
    return %c0_i32, %c0_i32_0 : i32, i32
  }
  func.func @transform_2(%arg0: i32, %arg1: i32) -> (i32, i32) {
    %c0_i32 = arith.constant 0 : i32
    %c0_i32_0 = arith.constant 0 : i32
    %c0_i32_1 = arith.constant 0 : i32
    return %c0_i32, %c0_i32_0 : i32, i32
  }
  func.func @transform_3(%arg0: i32, %arg1: i32) -> (i32, i32) {
    %c0_i32 = arith.constant 0 : i32
    %c0_i32_0 = arith.constant 0 : i32
    %c0_i32_1 = arith.constant 0 : i32
    return %c0_i32, %c0_i32_0 : i32, i32
  }
  func.func @transform_4(%arg0: i32, %arg1: i32) -> (i32, i32) {
    %c0_i32 = arith.constant 0 : i32
    %c0_i32_0 = arith.constant 0 : i32
    %c0_i32_1 = arith.constant 0 : i32
    return %c0_i32, %c0_i32_0 : i32, i32
  }
  func.func @transform_5(%arg0: i32, %arg1: i32) -> (i32, i32, i32) {
    %c0_i32 = arith.constant 0 : i32
    %c0_i32_0 = arith.constant 0 : i32
    %c0_i32_1 = arith.constant 0 : i32
    return %arg0, %c0_i32, %c0_i32_0 : i32, i32, i32
  }
  func.func @transform_6(%arg0: i32, %arg1: i32) -> (i32, i32, i32) {
    %c0_i32 = arith.constant 0 : i32
    %c0_i32_0 = arith.constant 0 : i32
    %c0_i32_1 = arith.constant 0 : i32
    return %arg0, %c0_i32, %c0_i32_0 : i32, i32, i32
  }
}

</mosaic_0001>

<llo_original>
// kernel: tpu_custom_call.1
$region0: #{tpu_custom_call.1}
  #allocation0 [shape = 'u32[]', space=smem, size = 0x4, offset = 0x4, fixed_abs, tag = 'smem constant byte address 0x4 - core index']
  #allocation1 [shape = 'u32[144,128]{1,0:T(1,128)}', space=vmem, size = 0x12000, scoped, tag = 'internal scratch']
  #allocation2 [shape = 'f32[32,2]{1,0:T(8,128)}', space=vmem, size = 0x4000, scoped, tag = 'scratch operand']
  %s0 = inlined_call_operand.vmem [shape: f32[2,4,256], index: 0, kind: input, shape index: {}]
  %s1 = inlined_call_operand.vmem [shape: f32[32,4], index: 1, kind: input, shape index: {}]
  %s2 = inlined_call_operand.vmem [shape: f32[32,1], index: 2, kind: input, shape index: {}]
  %s3 = inlined_call_operand.vmem [shape: f32[8,32], index: 3, kind: input, shape index: {}]
  %s4 = inlined_call_operand.vmem [shape: f32[8,1], index: 4, kind: input, shape index: {}]
  %s5 = inlined_call_operand.vmem [shape: f32[1,8,2], index: 5, kind: output, shape index: {0}]
  %s6 = inlined_call_operand.vmem [shape: f32[1,32,2], index: 6, kind: output, shape index: {1}]
  %7 = xla_tuple %s5, %s6
  %s8 = sld [smem:[#allocation0]]
  $region110: #{tpu_custom_call.1} parent=0
    _
  %s10 = ssub.s32 1, %s8
  %s11 = scalar_select 0, %s10, %s8
  $region1: #{tpu_custom_call.1} parent=0
    #allocation3 [shape = 'u8[8192]{0}', space=vmem, size = 0x2000, scoped, tag = 'input window, operand 0']
    loop: start=0, step=1, limit=4
    $region2: #{tpu_custom_call.1} parent=1 // loop_pre_header
      _
    $region3: #{tpu_custom_call.1} parent=1 // loop_header
      %s13 = sphi 0, %s17
      %p14 = scmp.ge.s32.totalorder %s13, 4
      %s20 = sphi 0, %s32
      %s21 = sphi 0, %s28
      %s22 = sphi 0, %s20
      %s23 = sphi 0, %s21
      %s24 = sphi 0, %s22
      %s25 = sphi 0, %s23
      %s37 = sphi 0, %s39
      %s40 = sphi 0, %s37
      %s41 = sphi 0, %s40
      %s57 = sphi 0, %s41
      %s61 = sphi 0, %s61
      %s63 = sphi 0, %s61
      %s64 = sphi 0, %s63
      %s78 = sphi 0, %s64
      %s82 = sphi 0, %s82
      %s84 = sphi 0, %s82
      %s85 = sphi 0, %s84
      %s99 = sphi 0, %s85
      %s103 = sphi 0, %s103
      %s105 = sphi 0, %s103
      %s106 = sphi 0, %s105
      %s120 = sphi 0, %s106
      %s124 = sphi 0, %s124
      %s126 = sphi 0, %s124
      %s127 = sphi 0, %s126
      %s141 = sphi 0, %s127
      %s147 = sphi 0, %s149
      %s150 = sphi 0, %s147
      %s151 = sphi 0, %s150
      %s167 = sphi 0, %s151
      %s173 = sphi 0, %s175
      %s176 = sphi 0, %s173
      %s177 = sphi 0, %s176
      %s193 = sphi 0, %s177
    $region4: #{tpu_custom_call.1} parent=1 // loop_header_branch
      %16 = sbr.rel (%p14) target = $region8
    $region5: #{tpu_custom_call.1} parent=1 // loop_body
      %s18 = ssub.s32 %s13, 1
      %s19 = ssub.s32 %s13, 2
      %s26 = sadd.s32 1, %s21
      %p27 = scmp.ge.s32.totalorder %s26, 2
      %s28 = scalar_select %p27, 0, %s26
      %s29 = sadd.s32 1, %s20
      %s30 = scalar_select %p27, %s29, %s20
      %p31 = scmp.ge.s32.totalorder %s30, 1
      %s32 = scalar_select %p31, 0, %s30
      %s33 = ssub.s32 %s20, %s32
      %s34 = ssub.s32 %s21, %s28
      %s35 = sor.u32 %s33, %s34
      %p36 = scmp.eq.s32.totalorder %s35, 0
      %s38 = sadd.s32 %s37, 1
      %s39 = scalar_select %p36, %s37, %s38
      %p42 = pneg %p36
      %p43 = scmp.eq.s32.totalorder %s13, 1
      %p44 = por %p42, %p43
      %p45 = scmp.ne.s32.totalorder %s37, %s40
      %p46 = scmp.eq.s32.totalorder %s13, 0
      %p47 = por %p45, %p46
      %p48 = scmp.ne.s32.totalorder %s37, %s40
      %p49 = scmp.eq.s32.totalorder %s18, 1
      %p50 = por %p48, %p49
      %p51 = scmp.ne.s32.totalorder %s40, %s41
      %p52 = scmp.eq.s32.totalorder %s18, 0
      %p53 = por %p51, %p52
      %p54 = scmp.ne.s32.totalorder %s40, %s41
      %p55 = scmp.eq.s32.totalorder %s19, 1
      %p56 = por %p54, %p55
      %p58 = scmp.ne.s32.totalorder %s41, %s57
      %p59 = scmp.eq.s32.totalorder %s19, 0
      %p60 = por %p58, %p59
      %s62 = sadd.s32 %s61, 1
      %p65 = scmp.eq.s32.totalorder %s13, 1
      %p66 = scmp.ne.s32.totalorder %s61, %s63
      %p67 = scmp.eq.s32.totalorder %s13, 0
      %p68 = por %p66, %p67
      %p69 = scmp.ne.s32.totalorder %s61, %s63
      %p70 = scmp.eq.s32.totalorder %s18, 1
      %p71 = por %p69, %p70
      %p72 = scmp.ne.s32.totalorder %s63, %s64
      %p73 = scmp.eq.s32.totalorder %s18, 0
      %p74 = por %p72, %p73
      %p75 = scmp.ne.s32.totalorder %s63, %s64
      %p76 = scmp.eq.s32.totalorder %s19, 1
      %p77 = por %p75, %p76
      %p79 = scmp.ne.s32.totalorder %s64, %s78
      %p80 = scmp.eq.s32.totalorder %s19, 0
      %p81 = por %p79, %p80
      %s83 = sadd.s32 %s82, 1
      %p86 = scmp.eq.s32.totalorder %s13, 1
      %p87 = scmp.ne.s32.totalorder %s82, %s84
      %p88 = scmp.eq.s32.totalorder %s13, 0
      %p89 = por %p87, %p88
      %p90 = scmp.ne.s32.totalorder %s82, %s84
      %p91 = scmp.eq.s32.totalorder %s18, 1
      %p92 = por %p90, %p91
      %p93 = scmp.ne.s32.totalorder %s84, %s85
      %p94 = scmp.eq.s32.totalorder %s18, 0
      %p95 = por %p93, %p94
      %p96 = scmp.ne.s32.totalorder %s84, %s85
      %p97 = scmp.eq.s32.totalorder %s19, 1
      %p98 = por %p96, %p97
      %p100 = scmp.ne.s32.totalorder %s85, %s99
      %p101 = scmp.eq.s32.totalorder %s19, 0
      %p102 = por %p100, %p101
      %s104 = sadd.s32 %s103, 1
      %p107 = scmp.eq.s32.totalorder %s13, 1
      %p108 = scmp.ne.s32.totalorder %s103, %s105
      %p109 = scmp.eq.s32.totalorder %s13, 0
      %p110 = por %p108, %p109
      %p111 = scmp.ne.s32.totalorder %s103, %s105
      %p112 = scmp.eq.s32.totalorder %s18, 1
      %p113 = por %p111, %p112
      %p114 = scmp.ne.s32.totalorder %s105, %s106
      %p115 = scmp.eq.s32.totalorder %s18, 0
      %p116 = por %p114, %p115
      %p117 = scmp.ne.s32.totalorder %s105, %s106
      %p118 = scmp.eq.s32.totalorder %s19, 1
      %p119 = por %p117, %p118
      %p121 = scmp.ne.s32.totalorder %s106, %s120
      %p122 = scmp.eq.s32.totalorder %s19, 0
      %p123 = por %p121, %p122
      %s125 = sadd.s32 %s124, 1
      %p128 = scmp.eq.s32.totalorder %s13, 1
      %p129 = scmp.ne.s32.totalorder %s124, %s126
      %p130 = scmp.eq.s32.totalorder %s13, 0
      %p131 = por %p129, %p130
      %p132 = scmp.ne.s32.totalorder %s124, %s126
      %p133 = scmp.eq.s32.totalorder %s18, 1
      %p134 = por %p132, %p133
      %p135 = scmp.ne.s32.totalorder %s126, %s127
      %p136 = scmp.eq.s32.totalorder %s18, 0
      %p137 = por %p135, %p136
      %p138 = scmp.ne.s32.totalorder %s126, %s127
      %p139 = scmp.eq.s32.totalorder %s19, 1
      %p140 = por %p138, %p139
      %p142 = scmp.ne.s32.totalorder %s127, %s141
      %p143 = scmp.eq.s32.totalorder %s19, 0
      %p144 = por %p142, %p143
      %s145 = ssub.s32 %s20, %s32
      %p146 = scmp.eq.s32.totalorder %s145, 0
      %s148 = sadd.s32 %s147, 1
      %s149 = scalar_select %p146, %s147, %s148
      %p152 = pneg %p146
      %p153 = scmp.eq.s32.totalorder %s13, 1
      %p154 = por %p152, %p153
      %p155 = scmp.ne.s32.totalorder %s147, %s150
      %p156 = scmp.eq.s32.totalorder %s13, 0
      %p157 = por %p155, %p156
      %p158 = scmp.ne.s32.totalorder %s147, %s150
      %p159 = scmp.eq.s32.totalorder %s18, 1
      %p160 = por %p158, %p159
      %p161 = scmp.ne.s32.totalorder %s150, %s151
      %p162 = scmp.eq.s32.totalorder %s18, 0
      %p163 = por %p161, %p162
      %p164 = scmp.ne.s32.totalorder %s150, %s151
      %p165 = scmp.eq.s32.totalorder %s19, 1
      %p166 = por %p164, %p165
      %p168 = scmp.ne.s32.totalorder %s151, %s167
      %p169 = scmp.eq.s32.totalorder %s19, 0
      %p170 = por %p168, %p169
      %s171 = ssub.s32 %s20, %s32
      %p172 = scmp.eq.s32.totalorder %s171, 0
      %s174 = sadd.s32 %s173, 1
      %s175 = scalar_select %p172, %s173, %s174
      %p178 = pneg %p172
      %p179 = scmp.eq.s32.totalorder %s13, 1
      %p180 = por %p178, %p179
      %p181 = scmp.ne.s32.totalorder %s173, %s176
      %p182 = scmp.eq.s32.totalorder %s13, 0
      %p183 = por %p181, %p182
      %p184 = scmp.ne.s32.totalorder %s173, %s176
      %p185 = scmp.eq.s32.totalorder %s18, 1
      %p186 = por %p184, %p185
      %p187 = scmp.ne.s32.totalorder %s176, %s177
      %p188 = scmp.eq.s32.totalorder %s18, 0
      %p189 = por %p187, %p188
      %p190 = scmp.ne.s32.totalorder %s176, %s177
      %p191 = scmp.eq.s32.totalorder %s19, 1
      %p192 = por %p190, %p191
      %p194 = scmp.ne.s32.totalorder %s177, %s193
      %p195 = scmp.eq.s32.totalorder %s19, 0
      %p196 = por %p194, %p195
      %p197 = scmp.le.s32.totalorder 1, %s13
      %p198 = scmp.lt.s32.totalorder %s13, 3
      %p199 = pnand %p197, %p198
      %p200 = pneg %p199
      // Predicated region
      $region9: #{tpu_custom_call.1} parent=5 // pred_check
        _
      $region10: #{tpu_custom_call.1} parent=5 // pred_check_branch
        %202 = sbr.rel (%p199) target = $region12
      $region11: #{tpu_custom_call.1} parent=5 // pred_region
        %s203 = ssub.s32 %s13, 1
        // Predicated region
        $region13: #{tpu_custom_call.1} parent=11 // pred_check
          %p204 = pneg %p74
        $region14: #{tpu_custom_call.1} parent=11 // pred_check_branch
          %206 = sbr.rel (%p204) target = $region16
        $region15: #{tpu_custom_call.1} parent=11 // pred_region
          _
        $region16: #{tpu_custom_call.1} parent=11 // pred_fallthru
          _
        // Predicated region
        $region17: #{tpu_custom_call.1} parent=11 // pred_check
          %p207 = pneg %p95
        $region18: #{tpu_custom_call.1} parent=11 // pred_check_branch
          %209 = sbr.rel (%p207) target = $region20
        $region19: #{tpu_custom_call.1} parent=11 // pred_region
          _
        $region20: #{tpu_custom_call.1} parent=11 // pred_fallthru
          _
        // Predicated region
        $region21: #{tpu_custom_call.1} parent=11 // pred_check
          %p210 = pneg %p116
        $region22: #{tpu_custom_call.1} parent=11 // pred_check_branch
          %212 = sbr.rel (%p210) target = $region24
        $region23: #{tpu_custom_call.1} parent=11 // pred_region
          _
        $region24: #{tpu_custom_call.1} parent=11 // pred_fallthru
          _
        // Predicated region
        $region25: #{tpu_custom_call.1} parent=11 // pred_check
          %p213 = pneg %p137
        $region26: #{tpu_custom_call.1} parent=11 // pred_check_branch
          %215 = sbr.rel (%p213) target = $region28
        $region27: #{tpu_custom_call.1} parent=11 // pred_region
          _
        $region28: #{tpu_custom_call.1} parent=11 // pred_fallthru
          _
      $region12: #{tpu_custom_call.1} parent=5 // pred_fallthru
        _
      %p216 = scmp.lt.s32.totalorder %s13, 2
      // Predicated region
      $region29: #{tpu_custom_call.1} parent=5 // pred_check
        %p217 = pneg %p216
      $region30: #{tpu_custom_call.1} parent=5 // pred_check_branch
        %219 = sbr.rel (%p217) target = $region32
      $region31: #{tpu_custom_call.1} parent=5 // pred_region
        // Predicated region
        $region33: #{tpu_custom_call.1} parent=31 // pred_check
          %p220 = pneg %p47
        $region34: #{tpu_custom_call.1} parent=31 // pred_check_branch
          %222 = sbr.rel (%p220) target = $region36
        $region35: #{tpu_custom_call.1} parent=31 // pred_region
          %s223 = sand.u32 %s37, 1
          %s224 = sand.u32 %s37, 1
          %s225 = smul.addr %s224, 8
          %s226 = scalar_lea.vmem [#allocation3], %s225
          %s227 = smul.u32 2, %s20
          %s228 = smul.addr %s227, 2
          %s229 = sadd.s32 %s21, %s228
          %s230 = smul.addr %s229, 4
          %s231 = scalar_lea.vmem %s0, %s230
          // Predicated region
          $region37: #{tpu_custom_call.1} parent=35 // pred_check
            _
          $region38: #{tpu_custom_call.1} parent=35 // pred_check_branch
            %233 = sbr.rel (0) target = $region40
          $region39: #{tpu_custom_call.1} parent=35 // pred_region
            // Predicated region
            $region41: #{tpu_custom_call.1} parent=39 // pred_check
              _
            $region42: #{tpu_custom_call.1} parent=39 // pred_check_branch
              %235 = sbr.rel target = $region44
            $region43: #{tpu_custom_call.1} parent=39 // pred_region
              // Predicated region
              $region56: #{tpu_custom_call.1} parent=43 // pred_check
                _
              $region57: #{tpu_custom_call.1} parent=43 // pred_check_branch
                %252 = sbr.rel (0) target = $region59
              $region58: #{tpu_custom_call.1} parent=43 // pred_region
                loop: start=0, step=1, limit=1
                $region60: #{tpu_custom_call.1} parent=58 // loop_pre_header
                  _
                $region61: #{tpu_custom_call.1} parent=58 // loop_header
                  %s254 = sphi 0, %s258
                  %p255 = scmp.ge.s32.totalorder %s254, 1
                  %s259 = sphi %s231, %s231
                  %s260 = sphi %s226, %s226
                $region62: #{tpu_custom_call.1} parent=58 // loop_header_branch
                  %257 = sbr.rel (%p255) target = $region66
                $region63: #{tpu_custom_call.1} parent=58 // loop_body
                  _
                $region64: #{tpu_custom_call.1} parent=58 // loop_footer
                  %s258 = sadd.s32 1, %s254
                $region65: #{tpu_custom_call.1} parent=58 // loop_footer_branch
                  %253 = sbr.rel target = $region61
                $region66: #{tpu_custom_call.1} parent=58 // loop_exit
                  _
                loop: start=0, step=1, limit=1
                $region67: #{tpu_custom_call.1} parent=58 // loop_pre_header
                  _
                $region68: #{tpu_custom_call.1} parent=58 // loop_header
                  %s263 = sphi 0, %s267
                  %p264 = scmp.ge.s32.totalorder %s263, 1
                  %s268 = sphi %s231, %s231
                  %s269 = sphi %s226, %s226
                $region69: #{tpu_custom_call.1} parent=58 // loop_header_branch
                  %266 = sbr.rel (%p264) target = $region73
                $region70: #{tpu_custom_call.1} parent=58 // loop_body
                  %v270 = vld [vmem:[%s268] sm:$0xf]
                  %271 = vst [vmem:[%s269] sm:$0xf] %v270
                  %v272 = vld [vmem:[%s268 + $0x8] sm:$0xf]
                  %273 = vst [vmem:[%s269 + $0x4] sm:$0xf] %v272
                $region71: #{tpu_custom_call.1} parent=58 // loop_footer
                  %s267 = sadd.s32 1, %s263
                $region72: #{tpu_custom_call.1} parent=58 // loop_footer_branch
                  %262 = sbr.rel target = $region68
                $region73: #{tpu_custom_call.1} parent=58 // loop_exit
                  _
              $region59: #{tpu_custom_call.1} parent=43 // pred_fallthru
                _
            $region44: #{tpu_custom_call.1} parent=39 // pred_fallthru
              _
            // Predicated region
            $region45: #{tpu_custom_call.1} parent=39 // pred_check
              _
            $region46: #{tpu_custom_call.1} parent=39 // pred_check_branch
              %237 = sbr.rel (0) target = $region48
            $region47: #{tpu_custom_call.1} parent=39 // pred_region
              loop: start=0, step=1, limit=1
              $region49: #{tpu_custom_call.1} parent=47 // loop_pre_header
                _
              $region50: #{tpu_custom_call.1} parent=47 // loop_header
                %s240 = sphi 0, %s244
                %p241 = scmp.ge.s32.totalorder %s240, 1
                %s245 = sphi %s231, %s231
                %s246 = sphi %s226, %s226
              $region51: #{tpu_custom_call.1} parent=47 // loop_header_branch
                %243 = sbr.rel (%p241) target = $region55
              $region52: #{tpu_custom_call.1} parent=47 // loop_body
                %v247 = vld [vmem:[%s245] sm:$0xf]
                %248 = vst [vmem:[%s246] sm:$0xf] %v247
                %v249 = vld [vmem:[%s245 + $0x8] sm:$0xf]
                %250 = vst [vmem:[%s246 + $0x4] sm:$0xf] %v249
              $region53: #{tpu_custom_call.1} parent=47 // loop_footer
                %s244 = sadd.s32 1, %s240
              $region54: #{tpu_custom_call.1} parent=47 // loop_footer_branch
                %239 = sbr.rel target = $region50
              $region55: #{tpu_custom_call.1} parent=47 // loop_exit
                _
            $region48: #{tpu_custom_call.1} parent=39 // pred_fallthru
              _
          $region40: #{tpu_custom_call.1} parent=35 // pred_fallthru
            _
          %274 = vnop
        $region36: #{tpu_custom_call.1} parent=31 // pred_fallthru
          _
      $region32: #{tpu_custom_call.1} parent=5 // pred_fallthru
        _
      %p275 = scmp.le.s32.totalorder 1, %s13
      %p276 = scmp.lt.s32.totalorder %s13, 3
      %p277 = pnand %p275, %p276
      %p278 = pneg %p277
      // Predicated region
      $region74: #{tpu_custom_call.1} parent=5 // pred_check
        _
      $region75: #{tpu_custom_call.1} parent=5 // pred_check_branch
        %280 = sbr.rel (%p277) target = $region77
      $region76: #{tpu_custom_call.1} parent=5 // pred_region
        %s281 = ssub.s32 %s13, 1
        %s282 = sand.u32 %s40, 1
        %s283 = sand.u32 %s40, 1
        %s284 = smul.addr %s283, 8
        %s285 = scalar_lea.vmem [#allocation3], %s284
        // Predicated region
        $region78: #{tpu_custom_call.1} parent=76 // pred_check
          %p286 = pneg %p53
        $region79: #{tpu_custom_call.1} parent=76 // pred_check_branch
          %288 = sbr.rel (%p286) target = $region81
        $region80: #{tpu_custom_call.1} parent=76 // pred_region
          _
        $region81: #{tpu_custom_call.1} parent=76 // pred_fallthru
          _
        %s289 = sand.u32 %s40, 1
        %s290 = sand.u32 %s40, 1
        %s291 = smul.addr %s290, 8
        %s292 = scalar_lea.vmem [#allocation3], %s291
        %p293 = pneg %p53
        %p294 = pneg %p50
        %p295 = pneg %p74
        %p296 = pneg %p71
        %p297 = pneg %p95
        %p298 = pneg %p92
        %p299 = pneg %p116
        %p300 = pneg %p113
        %p301 = pneg %p137
        %p302 = pneg %p134
        %p303 = pneg %p163
        %p304 = pneg %p160
        %p305 = scmp.lt.s32.totalorder %s22, 0
        %s306 = scalar_select %p305, %s22, 0
        %s307 = smul.addr %s306, 8
        %s308 = scalar_lea.vmem %s5, %s307
        %p309 = pneg %p189
        %p310 = pneg %p186
        %p311 = scmp.lt.s32.totalorder %s22, 0
        %s312 = scalar_select %p311, %s22, 0
        %s313 = smul.addr %s312, 4
        %s314 = smul.addr %s313, 8
        %s315 = scalar_lea.vmem %s6, %s314
        %s316 = smul.u32 2, %s22
        %p317 = scmp.lt.s32.totalorder %s22, 0
        %s318 = scalar_select %p317, %s22, 0
        %s319 = smul.addr %s318, 8
        %s320 = scalar_lea.vmem %s5, %s319
        %p321 = scmp.lt.s32.totalorder %s22, 0
        %s322 = scalar_select %p321, %s22, 0
        %s323 = smul.addr %s322, 4
        %s324 = smul.addr %s323, 8
        %s325 = scalar_lea.vmem %s6, %s324
        %p326 = scmp.eq.s32.totalorder %s23, 0
        // Predicated region
        $region82: #{tpu_custom_call.1} parent=76 // pred_check
          %p327 = pneg %p326
        $region83: #{tpu_custom_call.1} parent=76 // pred_check_branch
          %329 = sbr.rel (%p327) target = $region85
        $region84: #{tpu_custom_call.1} parent=76 // pred_region
          %vm330 = vcmask 15360
          %331 = vst.msk [vmem:[#allocation2] sm:$0xff] %vm330, 0.0
          %332 = vst.msk [vmem:[#allocation2 + $0x8] sm:$0xff] %vm330, 0.0
          %333 = vst.msk [vmem:[#allocation2 + $0x10] sm:$0xff] %vm330, 0.0
          %334 = vst.msk [vmem:[#allocation2 + $0x18] sm:$0xff] %vm330, 0.0
        $region85: #{tpu_custom_call.1} parent=76 // pred_fallthru
          _
        %v335 = vld [vmem:[%s1] sm:$0xff]
        %v336 = vld [vmem:[%s1 + $0x8] sm:$0xff]
        %v337 = vld [vmem:[%s1 + $0x10] sm:$0xff]
        %v338 = vld [vmem:[%s1 + $0x18] sm:$0xff]
        %v339 = vld [vmem:[%s2] sm:$0xff]
        %v340 = vld [vmem:[%s2 + $0x8] sm:$0xff]
        %v341 = vld [vmem:[%s2 + $0x10] sm:$0xff]
        %v342 = vld [vmem:[%s2 + $0x18] sm:$0xff]
        %v343 = vld [vmem:[%s285] sm:$0xf]
        %345 = vset.pattern.permute.xlu0 0
        %346 = vperm.xlu0 %345, %v339
        %v347 = vpop.permute.xlu0 %346
        %350 = vset.pattern.permute.xlu0 0
        %351 = vperm.xlu0 %350, %v340
        %v352 = vpop.permute.xlu0 %351
        %355 = vset.pattern.permute.xlu0 0
        %356 = vperm.xlu0 %355, %v341
        %v357 = vpop.permute.xlu0 %356
        %360 = vset.pattern.permute.xlu0 0
        %361 = vperm.xlu0 %360, %v342
        %v362 = vpop.permute.xlu0 %361
        %vm364 = vcmask 31744
        %v366 = vsel %vm364, %v335, 0
        %v369 = vsel %vm364, %v336, 0
        %v372 = vsel %vm364, %v337, 0
        %v375 = vsel %vm364, %v338, 0
        %vm377 = vcmask 1043456
        %v379 = vsel %vm377, %v343, 0
        %381 = vmatprep.subr.mxu0 0.0
        %382 = vmatpush1.msra.mxu0 %v379
        %383 = vmatprep.subr.mxu0 0.0
        %384 = vmatpush1.msra.mxu0 0.0
        %385 = vmatprep.subr.mxu0 0.0
        %386 = vmatpush1.msra.mxu0 0.0
        %387 = vmatprep.subr.mxu0 0.0
        %388 = vmatpush1.msra.mxu0 0.0
        %389 = vmatprep.subr.mxu0 0.0
        %390 = vmatpush1.msra.mxu0 0.0
        %391 = vmatprep.subr.mxu0 0.0
        %392 = vmatpush1.msra.mxu0 0.0
        %393 = vmatprep.subr.mxu0 0.0
        %394 = vmatpush1.msra.mxu0 0.0
        %395 = vmatprep.subr.mxu0 0.0
        %396 = vmatpush1.msra.mxu0 0.0
        %397 = vmatprep.subr.mxu0 0.0
        %398 = vmatpush1.msra.mxu0 0.0
        %399 = vmatprep.subr.mxu0 0.0
        %400 = vmatpush1.msra.mxu0 0.0
        %401 = vmatprep.subr.mxu0 0.0
        %402 = vmatpush1.msra.mxu0 0.0
        %403 = vmatprep.subr.mxu0 0.0
        %404 = vmatpush1.msra.mxu0 0.0
        %405 = vmatprep.subr.mxu0 0.0
        %406 = vmatpush1.msra.mxu0 0.0
        %407 = vmatprep.subr.mxu0 0.0
        %408 = vmatpush1.msra.mxu0 0.0
        %409 = vmatprep.subr.mxu0 0.0
        %410 = vmatpush1.msra.mxu0 0.0
        %411 = vmatprep.subr.mxu0 0.0
        %412 = vmatpush1.msra.mxu0 0.0
        %413 = vmatprep.subr.mxu0 0.0
        %414 = vmatpush1.msra.mxu0 0.0
        %415 = vmatprep.subr.mxu0 0.0
        %416 = vmatpush1.msra.mxu0 0.0
        %417 = vmatprep.subr.mxu0 0.0
        %418 = vmatpush1.msra.mxu0 0.0
        %419 = vmatprep.subr.mxu0 0.0
        %420 = vmatpush1.msra.mxu0 0.0
        %421 = vmatprep.subr.mxu0 0.0
        %422 = vmatpush1.msra.mxu0 0.0
        %423 = vmatprep.subr.mxu0 0.0
        %424 = vmatpush1.msra.mxu0 0.0
        %425 = vmatprep.subr.mxu0 0.0
        %426 = vmatpush1.msra.mxu0 0.0
        %427 = vmatprep.subr.mxu0 0.0
        %428 = vmatpush1.msra.mxu0 0.0
        %429 = vmatprep.subr.mxu0 0.0
        %430 = vmatpush1.msra.mxu0 0.0
        %431 = vmatprep.subr.mxu0 0.0
        %432 = vmatpush1.msra.mxu0 0.0
        %433 = vmatprep.subr.mxu0 0.0
        %434 = vmatpush1.msra.mxu0 0.0
        %435 = vmatprep.subr.mxu0 0.0
        %436 = vmatpush1.msra.mxu0 0.0
        %437 = vmatprep.subr.mxu0 0.0
        %438 = vmatpush1.msra.mxu0 0.0
        %439 = vmatprep.subr.mxu0 0.0
        %440 = vmatpush1.msra.mxu0 0.0
        %441 = vmatprep.subr.mxu0 0.0
        %442 = vmatpush1.msra.mxu0 0.0
        %443 = vmatprep.subr.mxu0 0.0
        %444 = vmatpush1.msra.mxu0 0.0
        %445 = vmatprep.mubr.f32.mxu0 0.0
        %446 = vmatmul.mubr.f32.gmra.mrb[0].mxu0 %v366
        %v447 = vpop.f32.mrb[0].mxu0
        %v448 = vadd.f32 %v347, %v447
        %v449 = vpop.f32.mrb[0].mxu0
        %450 = vmatprep.mubr.f32.mxu0 0.0
        %451 = vmatmul.mubr.f32.gmra.mrb[0].mxu0 %v369
        %v452 = vpop.f32.mrb[0].mxu0
        %v453 = vadd.f32 %v352, %v452
        %v454 = vpop.f32.mrb[0].mxu0
        %455 = vmatprep.mubr.f32.mxu0 0.0
        %456 = vmatmul.mubr.f32.gmra.mrb[0].mxu0 %v372
        %v457 = vpop.f32.mrb[0].mxu0
        %v458 = vadd.f32 %v357, %v457
        %v459 = vpop.f32.mrb[0].mxu0
        %460 = vmatprep.mubr.f32.mxu0 0.0
        %461 = vmatmul.mubr.f32.gmra.mrb[0].mxu0 %v375
        %v462 = vpop.f32.mrb[0].mxu0
        %v463 = vadd.f32 %v362, %v462
        %v464 = vpop.f32.mrb[0].mxu0
        %465 = vdwg.mxu0
        %v466 = vmax.f32 %v448, 0.0
        %v467 = vmax.f32 %v453, 0.0
        %v468 = vmax.f32 %v458, 0.0
        %v469 = vmax.f32 %v463, 0.0
        %470 = vadd.xlane.f32.xlu0 %v466
        %v471 = vpop.xlane.xlu0 %470
        %472 = vadd.xlane.f32.xlu0 %v467
        %v473 = vpop.xlane.xlu0 %472
        %474 = vadd.xlane.f32.xlu0 %v468
        %v475 = vpop.xlane.xlu0 %474
        %476 = vadd.xlane.f32.xlu0 %v469
        %v477 = vpop.xlane.xlu0 %476
        %v478 = vld [vmem:[#allocation2] sm:$0xff]
        %v479 = vld [vmem:[#allocation2 + $0x8] sm:$0xff]
        %v480 = vld [vmem:[#allocation2 + $0x10] sm:$0xff]
        %v481 = vld [vmem:[#allocation2 + $0x18] sm:$0xff]
        %v482 = vadd.f32 %v478, %v471
        %v483 = vadd.f32 %v479, %v473
        %v484 = vadd.f32 %v480, %v475
        %v485 = vadd.f32 %v481, %v477
        %vm486 = vcmask 7168
        %487 = vst.msk [vmem:[#allocation2] sm:$0xff] %vm486, %v482
        %488 = vst.msk [vmem:[#allocation2 + $0x8] sm:$0xff] %vm486, %v483
        %489 = vst.msk [vmem:[#allocation2 + $0x10] sm:$0xff] %vm486, %v484
        %490 = vst.msk [vmem:[#allocation2 + $0x18] sm:$0xff] %vm486, %v485
        %s491 = scalar_lea.vmem %s285, 4 [#allocation3]
        %v492 = vld [vmem:[%s491] sm:$0xf]
        %v494 = vsel %vm377, %v492, 0
        %496 = vmatprep.subr.mxu0 0.0
        %497 = vmatpush1.msra.mxu0 %v494
        %498 = vmatprep.subr.mxu0 0.0
        %499 = vmatpush1.msra.mxu0 0.0
        %500 = vmatprep.subr.mxu0 0.0
        %501 = vmatpush1.msra.mxu0 0.0
        %502 = vmatprep.subr.mxu0 0.0
        %503 = vmatpush1.msra.mxu0 0.0
        %504 = vmatprep.subr.mxu0 0.0
        %505 = vmatpush1.msra.mxu0 0.0
        %506 = vmatprep.subr.mxu0 0.0
        %507 = vmatpush1.msra.mxu0 0.0
        %508 = vmatprep.subr.mxu0 0.0
        %509 = vmatpush1.msra.mxu0 0.0
        %510 = vmatprep.subr.mxu0 0.0
        %511 = vmatpush1.msra.mxu0 0.0
        %512 = vmatprep.subr.mxu0 0.0
        %513 = vmatpush1.msra.mxu0 0.0
        %514 = vmatprep.subr.mxu0 0.0
        %515 = vmatpush1.msra.mxu0 0.0
        %516 = vmatprep.subr.mxu0 0.0
        %517 = vmatpush1.msra.mxu0 0.0
        %518 = vmatprep.subr.mxu0 0.0
        %519 = vmatpush1.msra.mxu0 0.0
        %520 = vmatprep.subr.mxu0 0.0
        %521 = vmatpush1.msra.mxu0 0.0
        %522 = vmatprep.subr.mxu0 0.0
        %523 = vmatpush1.msra.mxu0 0.0
        %524 = vmatprep.subr.mxu0 0.0
        %525 = vmatpush1.msra.mxu0 0.0
        %526 = vmatprep.subr.mxu0 0.0
        %527 = vmatpush1.msra.mxu0 0.0
        %528 = vmatprep.subr.mxu0 0.0
        %529 = vmatpush1.msra.mxu0 0.0
        %530 = vmatprep.subr.mxu0 0.0
        %531 = vmatpush1.msra.mxu0 0.0
        %532 = vmatprep.subr.mxu0 0.0
        %533 = vmatpush1.msra.mxu0 0.0
        %534 = vmatprep.subr.mxu0 0.0
        %535 = vmatpush1.msra.mxu0 0.0
        %536 = vmatprep.subr.mxu0 0.0
        %537 = vmatpush1.msra.mxu0 0.0
        %538 = vmatprep.subr.mxu0 0.0
        %539 = vmatpush1.msra.mxu0 0.0
        %540 = vmatprep.subr.mxu0 0.0
        %541 = vmatpush1.msra.mxu0 0.0
        %542 = vmatprep.subr.mxu0 0.0
        %543 = vmatpush1.msra.mxu0 0.0
        %544 = vmatprep.subr.mxu0 0.0
        %545 = vmatpush1.msra.mxu0 0.0
        %546 = vmatprep.subr.mxu0 0.0
        %547 = vmatpush1.msra.mxu0 0.0
        %548 = vmatprep.subr.mxu0 0.0
        %549 = vmatpush1.msra.mxu0 0.0
        %550 = vmatprep.subr.mxu0 0.0
        %551 = vmatpush1.msra.mxu0 0.0
        %552 = vmatprep.subr.mxu0 0.0
        %553 = vmatpush1.msra.mxu0 0.0
        %554 = vmatprep.subr.mxu0 0.0
        %555 = vmatpush1.msra.mxu0 0.0
        %556 = vmatprep.subr.mxu0 0.0
        %557 = vmatpush1.msra.mxu0 0.0
        %558 = vmatprep.subr.mxu0 0.0
        %559 = vmatpush1.msra.mxu0 0.0
        %560 = vmatprep.mubr.f32.mxu0 0.0
        %561 = vmatmul.mubr.f32.gmra.mrb[0].mxu0 %v366
        %v562 = vpop.f32.mrb[0].mxu0
        %v563 = vadd.f32 %v347, %v562
        %v564 = vpop.f32.mrb[0].mxu0
        %565 = vmatprep.mubr.f32.mxu0 0.0
        %566 = vmatmul.mubr.f32.gmra.mrb[0].mxu0 %v369
        %v567 = vpop.f32.mrb[0].mxu0
        %v568 = vadd.f32 %v352, %v567
        %v569 = vpop.f32.mrb[0].mxu0
        %570 = vmatprep.mubr.f32.mxu0 0.0
        %571 = vmatmul.mubr.f32.gmra.mrb[0].mxu0 %v372
        %v572 = vpop.f32.mrb[0].mxu0
        %v573 = vadd.f32 %v357, %v572
        %v574 = vpop.f32.mrb[0].mxu0
        %575 = vmatprep.mubr.f32.mxu0 0.0
        %576 = vmatmul.mubr.f32.gmra.mrb[0].mxu0 %v375
        %v577 = vpop.f32.mrb[0].mxu0
        %v578 = vadd.f32 %v362, %v577
        %v579 = vpop.f32.mrb[0].mxu0
        %580 = vdwg.mxu0
        %v581 = vmax.f32 %v563, 0.0
        %v582 = vmax.f32 %v568, 0.0
        %v583 = vmax.f32 %v573, 0.0
        %v584 = vmax.f32 %v578, 0.0
        %585 = vadd.xlane.f32.xlu0 %v581
        %v586 = vpop.xlane.xlu0 %585
        %587 = vadd.xlane.f32.xlu0 %v582
        %v588 = vpop.xlane.xlu0 %587
        %589 = vadd.xlane.f32.xlu0 %v583
        %v590 = vpop.xlane.xlu0 %589
        %591 = vadd.xlane.f32.xlu0 %v584
        %v592 = vpop.xlane.xlu0 %591
        %v593 = vld [vmem:[#allocation2] sm:$0xff]
        %v594 = vld [vmem:[#allocation2 + $0x8] sm:$0xff]
        %v595 = vld [vmem:[#allocation2 + $0x10] sm:$0xff]
        %v596 = vld [vmem:[#allocation2 + $0x18] sm:$0xff]
        %v597 = vadd.f32 %v593, %v586
        %v598 = vadd.f32 %v594, %v588
        %v599 = vadd.f32 %v595, %v590
        %v600 = vadd.f32 %v596, %v592
        %vm601 = vcmask 15368
        %602 = vst.msk [vmem:[#allocation2] sm:$0xff] %vm601, %v597
        %603 = vst.msk [vmem:[#allocation2 + $0x8] sm:$0xff] %vm601, %v598
        %604 = vst.msk [vmem:[#allocation2 + $0x10] sm:$0xff] %vm601, %v599
        %605 = vst.msk [vmem:[#allocation2 + $0x18] sm:$0xff] %vm601, %v600
        %p606 = scmp.eq.s32.totalorder %s23, 1
        // Predicated region
        $region86: #{tpu_custom_call.1} parent=76 // pred_check
          %p607 = pneg %p606
        $region87: #{tpu_custom_call.1} parent=76 // pred_check_branch
          %609 = sbr.rel (%p607) target = $region89
        $region88: #{tpu_custom_call.1} parent=76 // pred_region
          %v610 = vld [vmem:[#allocation2] sm:$0xff]
          %v611 = vld [vmem:[#allocation2 + $0x8] sm:$0xff]
          %v612 = vld [vmem:[#allocation2 + $0x10] sm:$0xff]
          %v613 = vld [vmem:[#allocation2 + $0x18] sm:$0xff]
          %v614 = vmul.f32 %v610, 0.00390625
          %v615 = vmul.f32 %v611, 0.00390625
          %v616 = vmul.f32 %v612, 0.00390625
          %v617 = vmul.f32 %v613, 0.00390625
          %vm618 = vcmask 15360
          %619 = vst.msk [vmem:[%s325] sm:$0xff] %vm618, %v614
          %620 = vst.msk [vmem:[%s325 + $0x8] sm:$0xff] %vm618, %v615
          %621 = vst.msk [vmem:[%s325 + $0x10] sm:$0xff] %vm618, %v616
          %622 = vst.msk [vmem:[%s325 + $0x18] sm:$0xff] %vm618, %v617
          %v623 = vld [vmem:[%s3] sm:$0xff]
          %v624 = vld [vmem:[%s4] sm:$0xff]
          %626 = vset.pattern.permute.xlu0 0
          %627 = vperm.xlu0 %626, %v624
          %v628 = vpop.permute.xlu0 %627
          %vm630 = vcmask 261120
          %v632 = vsel %vm630, %v623, 0
          %634 = vmatprep.subr.mxu0 0.0
          %635 = vmatpush1.msra.mxu0 %v614
          %636 = vmatprep.subr.mxu0 0.0
          %637 = vmatpush1.msra.mxu0 %v615
          %638 = vmatprep.subr.mxu0 0.0
          %639 = vmatpush1.msra.mxu0 %v616
          %640 = vmatprep.subr.mxu0 0.0
          %641 = vmatpush1.msra.mxu0 %v617
          %642 = vmatprep.subr.mxu0 0.0
          %643 = vmatpush1.msra.mxu0 0.0
          %644 = vmatprep.subr.mxu0 0.0
          %645 = vmatpush1.msra.mxu0 0.0
          %646 = vmatprep.subr.mxu0 0.0
          %647 = vmatpush1.msra.mxu0 0.0
          %648 = vmatprep.subr.mxu0 0.0
          %649 = vmatpush1.msra.mxu0 0.0
          %650 = vmatprep.subr.mxu0 0.0
          %651 = vmatpush1.msra.mxu0 0.0
          %652 = vmatprep.subr.mxu0 0.0
          %653 = vmatpush1.msra.mxu0 0.0
          %654 = vmatprep.subr.mxu0 0.0
          %655 = vmatpush1.msra.mxu0 0.0
          %656 = vmatprep.subr.mxu0 0.0
          %657 = vmatpush1.msra.mxu0 0.0
          %658 = vmatprep.subr.mxu0 0.0
          %659 = vmatpush1.msra.mxu0 0.0
          %660 = vmatprep.subr.mxu0 0.0
          %661 = vmatpush1.msra.mxu0 0.0
          %662 = vmatprep.subr.mxu0 0.0
          %663 = vmatpush1.msra.mxu0 0.0
          %664 = vmatprep.subr.mxu0 0.0
          %665 = vmatpush1.msra.mxu0 0.0
          %666 = vmatprep.subr.mxu0 0.0
          %667 = vmatpush1.msra.mxu0 0.0
          %668 = vmatprep.subr.mxu0 0.0
          %669 = vmatpush1.msra.mxu0 0.0
          %670 = vmatprep.subr.mxu0 0.0
          %671 = vmatpush1.msra.mxu0 0.0
          %672 = vmatprep.subr.mxu0 0.0
          %673 = vmatpush1.msra.mxu0 0.0
          %674 = vmatprep.subr.mxu0 0.0
          %675 = vmatpush1.msra.mxu0 0.0
          %676 = vmatprep.subr.mxu0 0.0
          %677 = vmatpush1.msra.mxu0 0.0
          %678 = vmatprep.subr.mxu0 0.0
          %679 = vmatpush1.msra.mxu0 0.0
          %680 = vmatprep.subr.mxu0 0.0
          %681 = vmatpush1.msra.mxu0 0.0
          %682 = vmatprep.subr.mxu0 0.0
          %683 = vmatpush1.msra.mxu0 0.0
          %684 = vmatprep.subr.mxu0 0.0
          %685 = vmatpush1.msra.mxu0 0.0
          %686 = vmatprep.subr.mxu0 0.0
          %687 = vmatpush1.msra.mxu0 0.0
          %688 = vmatprep.subr.mxu0 0.0
          %689 = vmatpush1.msra.mxu0 0.0
          %690 = vmatprep.subr.mxu0 0.0
          %691 = vmatpush1.msra.mxu0 0.0
          %692 = vmatprep.subr.mxu0 0.0
          %693 = vmatpush1.msra.mxu0 0.0
          %694 = vmatprep.subr.mxu0 0.0
          %695 = vmatpush1.msra.mxu0 0.0
          %696 = vmatprep.subr.mxu0 0.0
          %697 = vmatpush1.msra.mxu0 0.0
          %698 = vmatprep.mubr.f32.mxu0 0.0
          %699 = vmatmul.mubr.f32.gmra.mrb[0].mxu0 %v632
          %v700 = vpop.f32.mrb[0].mxu0
          %v701 = vadd.f32 %v628, %v700
          %v702 = vpop.f32.mrb[0].mxu0
          %703 = vdwg.mxu0
          %704 = vst.msk [vmem:[%s320] sm:$0xff] %vm618, %v701
        $region89: #{tpu_custom_call.1} parent=76 // pred_fallthru
          _
        %p705 = scmp.lt.s32.totalorder %s22, 0
        %s706 = scalar_select %p705, %s22, 0
        %s707 = smul.addr %s706, 8
        %s708 = scalar_lea.vmem %s5, %s707
        %p709 = scmp.lt.s32.totalorder %s22, 0
        %s710 = scalar_select %p709, %s22, 0
        %s711 = smul.addr %s710, 4
        %s712 = smul.addr %s711, 8
        %s713 = scalar_lea.vmem %s6, %s712
        // Predicated region
        $region90: #{tpu_custom_call.1} parent=76 // pred_check
          %p714 = pneg %p160
        $region91: #{tpu_custom_call.1} parent=76 // pred_check_branch
          %716 = sbr.rel (%p714) target = $region93
        $region92: #{tpu_custom_call.1} parent=76 // pred_region
          _
        $region93: #{tpu_custom_call.1} parent=76 // pred_fallthru
          _
        // Predicated region
        $region94: #{tpu_custom_call.1} parent=76 // pred_check
          %p717 = pneg %p186
        $region95: #{tpu_custom_call.1} parent=76 // pred_check_branch
          %719 = sbr.rel (%p717) target = $region97
        $region96: #{tpu_custom_call.1} parent=76 // pred_region
          _
        $region97: #{tpu_custom_call.1} parent=76 // pred_fallthru
          _
        // Predicated region
        $region98: #{tpu_custom_call.1} parent=76 // pred_check
          %p720 = pneg %p160
        $region99: #{tpu_custom_call.1} parent=76 // pred_check_branch
          %722 = sbr.rel (%p720) target = $region101
        $region100: #{tpu_custom_call.1} parent=76 // pred_region
          %p723 = scmp.lt.s32.totalorder %s22, 0
          %s724 = scalar_select %p723, %s22, 0
          %s725 = smul.addr %s724, 8
          %s726 = scalar_lea.vmem %s5, %s725
        $region101: #{tpu_custom_call.1} parent=76 // pred_fallthru
          _
        // Predicated region
        $region102: #{tpu_custom_call.1} parent=76 // pred_check
          %p727 = pneg %p186
        $region103: #{tpu_custom_call.1} parent=76 // pred_check_branch
          %729 = sbr.rel (%p727) target = $region105
        $region104: #{tpu_custom_call.1} parent=76 // pred_region
          %p730 = scmp.lt.s32.totalorder %s22, 0
          %s731 = scalar_select %p730, %s22, 0
          %s732 = smul.addr %s731, 4
          %s733 = smul.addr %s732, 8
          %s734 = scalar_lea.vmem %s6, %s733
        $region105: #{tpu_custom_call.1} parent=76 // pred_fallthru
          _
      $region77: #{tpu_custom_call.1} parent=5 // pred_fallthru
        _
      %p735 = scmp.le.s32.totalorder 2, %s13
      // Predicated region
      $region106: #{tpu_custom_call.1} parent=5 // pred_check
        %p736 = pneg %p735
      $region107: #{tpu_custom_call.1} parent=5 // pred_check_branch
        %738 = sbr.rel (%p736) target = $region109
      $region108: #{tpu_custom_call.1} parent=5 // pred_region
        %s739 = ssub.s32 %s13, 2
      $region109: #{tpu_custom_call.1} parent=5 // pred_fallthru
        _
    $region6: #{tpu_custom_call.1} parent=1 // loop_footer
      %s17 = sadd.s32 1, %s13
    $region7: #{tpu_custom_call.1} parent=1 // loop_footer_branch
      %12 = sbr.rel target = $region3
    $region8: #{tpu_custom_call.1} parent=1 // loop_exit
      _

</llo_original>
